<compile_context>
chip_gen: v6e
topology: v6e:2x2x1
jax: 0.10.0
libtpu: 0.0.40
codegen_flags: <defaults>
</compile_context>

<pallas_src>
import functools

import jax
import jax.numpy as jnp
from jax.experimental import pallas as pl
from jax.experimental.pallas import tpu as pltpu

HALO = 128  # lane-aligned halo block width (minimum legal lane tile)


def _dsconv_kernel(xl_ref, xc_ref, xr_ref, wdw_ref, wpw_ref, b_ref, o_ref, *,
                   k, seq_len, tl, use_mxu, dot_dtype):
    """One (batch, sequence-tile) grid step, NCL layout.

    xl_ref : (1, C_in, 128)  x lanes [j*TL-128, j*TL)          (left halo)
    xc_ref : (1, C_in, TL)   x lanes [j*TL, (j+1)*TL)          (main tile)
    xr_ref : (1, C_in, 128)  x lanes [(j+1)*TL, (j+1)*TL+128)  (right halo)
    wdw_ref: (C_in, k)       depthwise taps, f32
    wpw_ref: (C_out, C_in)   pointwise weights, dot dtype
    b_ref  : (C_out, 1)      pointwise bias, f32
    o_ref  : (1, C_out, TL)  output tile (sequence on lanes -> dense stores)
    """
    j = pl.program_id(1)
    pad = k // 2

    # Lane-aligned window [left | main | right]; mask every column whose
    # global sequence index is outside [0, seq_len).  This implements the
    # Conv1d zero padding in-kernel and also zeroes garbage lanes of partial
    # edge blocks and of clamped halo blocks (first/last tiles).
    xw = jnp.concatenate([xl_ref[0], xc_ref[0], xr_ref[0]], axis=-1)
    xw = xw.astype(jnp.float32)                              # (C_in, TL+256)
    w = tl + 2 * HALO
    g = jax.lax.broadcasted_iota(jnp.int32, (1, w), 1) + (j * tl - HALO)
    xw = jnp.where((g >= 0) & (g < seq_len), xw, 0.0)

    # Depthwise conv: k static taps, unrolled; init with tap 0 (no zeros).
    # TODO(synk): on v6e/v7x the taps could stay bf16 (bf16 VALU) with an f32
    # accumulator; kept f32 for v5e parity and accuracy.
    wdw = wdw_ref[...]                                       # (C_in, k) f32
    base = HALO - pad
    dw = xw[:, base:base + tl] * wdw[:, 0:1]
    for t in range(1, k):
        dw = dw + xw[:, base + t:base + t + tl] * wdw[:, t:t + 1]

    bias = b_ref[...]                                        # (C_out, 1) f32
    if use_mxu:
        out = jnp.dot(wpw_ref[...], dw.astype(dot_dtype),
                      preferred_element_type=jnp.float32) + bias
    else:
        # Tiny channel counts: the 1x1 conv as C_in broadcast FMAs on the VPU
        # instead of wasting an MXU pass.
        wpw = wpw_ref[...]                                   # (C_out, C_in) f32
        c_in = wpw.shape[1]
        out = bias + wpw[:, 0:1] * dw[0:1, :]
        for c in range(1, c_in):
            out = out + wpw[:, c:c + 1] * dw[c:c + 1, :]

    o_ref[0, :, :] = jnp.maximum(out, 0.0).astype(o_ref.dtype)


def _round_up(x, m):
    return ((x + m - 1) // m) * m


def depthwise_separable_conv(x_ncl, w_dw, w_pw, bias, *, tl=2048):
    """y = relu(pointwise(depthwise(x))) in PyTorch NCL layout.

    x_ncl: (B, C_in, L)
    w_dw : (C_in, k)      depthwise weights (PyTorch (C_in, 1, k) squeezed)
    w_pw : (C_out, C_in)  pointwise weights (PyTorch (C_out, C_in, 1) squeezed)
    bias : (C_out,)       pointwise bias
    tl   : sequence tile size (rounded to a multiple of 128)
    returns (B, C_out, L), same dtype as x_ncl.
    """
    B, C_in, L = x_ncl.shape
    C_out = w_pw.shape[0]
    k = w_dw.shape[1]
    if k % 2 != 1:
        raise ValueError("padding=k//2 matches PyTorch Conv1d only for odd k")
    if k // 2 > HALO:
        raise ValueError("kernel size too large for the 128-wide halo blocks")

    # Sequence tile: multiple of 128, no larger than the rounded-up length.
    tl = max(HALO, (tl // HALO) * HALO)
    tl = min(tl, _round_up(L, HALO))
    # v7x shards "parallel" grid axes over 2 TensorCores: keep >=2 programs
    # whenever the problem allows it.
    if B * pl.cdiv(L, tl) < 2 and L > HALO:
        tl = _round_up(pl.cdiv(L, 2), HALO)
    n_tiles = pl.cdiv(L, tl)
    tl_blocks = tl // HALO
    max_blk = pl.cdiv(L, HALO) - 1

    # MXU only pays off when the contraction is not tiny in both dims.
    use_mxu = (C_in * C_out) >= 256
    dot_dtype = jnp.bfloat16 if x_ncl.dtype == jnp.bfloat16 else jnp.float32

    # Pre-cast the grid-resident weight blocks to their compute dtypes once,
    # so no per-step .astype on constant blocks inside the kernel.
    w_dw_c = w_dw.astype(jnp.float32)
    w_pw_c = w_pw.astype(dot_dtype if use_mxu else jnp.float32)
    b_col = bias.astype(jnp.float32).reshape(C_out, 1)

    def left_map(b, j):      # clamped: wrong data on j==0 is masked (g < 0)
        return (b, 0, jnp.maximum(j * tl_blocks - 1, 0))

    def main_map(b, j):
        return (b, 0, j)

    def right_map(b, j):     # clamped: wrong data on last tile is masked (g >= L)
        return (b, 0, jnp.minimum((j + 1) * tl_blocks, max_blk))

    def const_map(b, j):
        return (0, 0)

    kern = functools.partial(_dsconv_kernel, k=k, seq_len=L, tl=tl,
                             use_mxu=use_mxu, dot_dtype=dot_dtype)
    return pl.pallas_call(
        kern,
        out_shape=jax.ShapeDtypeStruct((B, C_out, L), x_ncl.dtype),
        grid_spec=pltpu.PrefetchScalarGridSpec(
            num_scalar_prefetch=0,
            grid=(B, n_tiles),
            in_specs=[
                pl.BlockSpec((1, C_in, HALO), left_map),    # left halo
                pl.BlockSpec((1, C_in, tl), main_map),      # main tile
                pl.BlockSpec((1, C_in, HALO), right_map),   # right halo
                pl.BlockSpec((C_in, k), const_map),         # depthwise taps
                pl.BlockSpec((C_out, C_in), const_map),     # pointwise weights
                pl.BlockSpec((C_out, 1), const_map),        # bias
            ],
            out_specs=pl.BlockSpec((1, C_out, tl), main_map),
        ),
        compiler_params=pltpu.CompilerParams(
            dimension_semantics=("parallel", "parallel"),
            vmem_limit_bytes=32 * 1024 * 1024),
    )(x_ncl, x_ncl, x_ncl, w_dw_c, w_pw_c, b_col)


def _reference(x_ncl, w_dw, w_pw, bias):
    """Pure-JAX reference (same math as the PyTorch module)."""
    B, C_in, L = x_ncl.shape
    k = w_dw.shape[1]
    pad = k // 2
    x_pad = jnp.pad(x_ncl.astype(jnp.float32), ((0, 0), (0, 0), (pad, pad)))
    dw = jnp.zeros((B, C_in, L), jnp.float32)
    for t in range(k):
        dw = dw + x_pad[:, :, t:t + L] * w_dw[:, t][None, :, None].astype(jnp.float32)
    out = jnp.einsum("bcl,oc->bol", dw, w_pw.astype(jnp.float32),
                     precision=jax.lax.Precision.HIGHEST)
    out = out + bias.astype(jnp.float32)[None, :, None]
    return jnp.maximum(out, 0.0)


if __name__ == "__main__":
    key = jax.random.PRNGKey(0)

    # (B, C_in, C_out, L, k, tl, dtype, tolerance)
    cases = [
        (2, 4, 8, 16, 5, 2048, jnp.float32, 1e-5),    # tiny L, VPU pointwise
        (2, 4, 8, 256, 7, 128, jnp.float32, 1e-5),    # 2 tiles, both halos, VPU
        (1, 8, 8, 300, 3, 2048, jnp.float32, 1e-5),   # B=1 -> tile split (>=2 programs)
        (2, 64, 64, 192, 7, 128, jnp.float32, 2e-2),  # partial last tile, MXU f32
        (2, 32, 16, 384, 5, 256, jnp.bfloat16, 3e-2), # bf16 I/O, MXU bf16
    ]
    for idx, (B, C_in, C_out, L, K, TL, dt, tol) in enumerate(cases):
        kx, kd, kp, kb, key = jax.random.split(key, 5)
        x = jax.random.normal(kx, (B, C_in, L), dtype=jnp.float32).astype(dt)
        w_dw = jax.random.normal(kd, (C_in, K), dtype=jnp.float32) * 0.2
        w_pw = jax.random.normal(kp, (C_out, C_in), dtype=jnp.float32) * 0.1
        b = jax.random.normal(kb, (C_out,), dtype=jnp.float32) * 0.1

        out = depthwise_separable_conv(x, w_dw, w_pw, b, tl=TL)
        out = jax.block_until_ready(out)

        ref = _reference(x, w_dw, w_pw, b)
        assert out.shape == (B, C_out, L), f"shape mismatch in case {idx}"
        assert out.dtype == dt, f"dtype mismatch in case {idx}"
        out_f32 = out.astype(jnp.float32)
        err = jnp.max(jnp.abs(out_f32 - ref))
        assert jnp.allclose(out_f32, ref, atol=tol, rtol=tol), (
            f"value mismatch in case {idx}: max abs err {err}")

    print("KERNEL_OK")
</pallas_src>

<mosaic_0001>
module attributes {stable_mosaic.version = 11 : i64} {
  func.func @_dsconv_kernel(%arg0: i32, %arg1: i32, %arg2: memref<1x4x128xf32, #tpu.memory_space<vmem>>, %arg3: memref<1x4x128xf32, #tpu.memory_space<vmem>>, %arg4: memref<1x4x128xf32, #tpu.memory_space<vmem>>, %arg5: memref<4x5xf32, #tpu.memory_space<vmem>>, %arg6: memref<8x4xf32, #tpu.memory_space<vmem>>, %arg7: memref<8x1xf32, #tpu.memory_space<vmem>>, %arg8: memref<1x8x128xf32, #tpu.memory_space<vmem>>) attributes {dimension_semantics = [#tpu.dimension_semantics<parallel>, #tpu.dimension_semantics<parallel>], iteration_bounds = array<i64: 2, 1>, scalar_prefetch = 0 : i64, scratch_operands = 0 : i64, tpu.core_type = #tpu.core_type<tc>, window_params = [{transform_indices = @transform_0, window_bounds = array<i64: 1, 4, 128>}, {transform_indices = @transform_1, window_bounds = array<i64: 1, 4, 128>}, {transform_indices = @transform_2, window_bounds = array<i64: 1, 4, 128>}, {pipeline_mode = #tpu.pipeline_mode<synchronous>, transform_indices = @transform_3, window_bounds = array<i64: 4, 5>}, {pipeline_mode = #tpu.pipeline_mode<synchronous>, transform_indices = @transform_4, window_bounds = array<i64: 8, 4>}, {pipeline_mode = #tpu.pipeline_mode<synchronous>, transform_indices = @transform_5, window_bounds = array<i64: 8, 1>}, {transform_indices = @transform_6, window_bounds = array<i64: 1, 8, 128>}]} {
    %c0 = arith.constant 0 : index
    %c0_0 = arith.constant 0 : index
    %c0_1 = arith.constant 0 : index
    %0 = vector.load %arg2[%c0, %c0_0, %c0_1] : memref<1x4x128xf32, #tpu.memory_space<vmem>>, vector<1x4x128xf32>
    %1 = vector.shape_cast %0 : vector<1x4x128xf32> to vector<4x128xf32>
    %c0_2 = arith.constant 0 : index
    %c0_3 = arith.constant 0 : index
    %c0_4 = arith.constant 0 : index
    %2 = vector.load %arg3[%c0_2, %c0_3, %c0_4] : memref<1x4x128xf32, #tpu.memory_space<vmem>>, vector<1x4x128xf32>
    %3 = vector.shape_cast %2 : vector<1x4x128xf32> to vector<4x128xf32>
    %c0_5 = arith.constant 0 : index
    %c0_6 = arith.constant 0 : index
    %c0_7 = arith.constant 0 : index
    %4 = vector.load %arg4[%c0_5, %c0_6, %c0_7] : memref<1x4x128xf32, #tpu.memory_space<vmem>>, vector<1x4x128xf32>
    %5 = vector.shape_cast %4 : vector<1x4x128xf32> to vector<4x128xf32>
    %6 = tpu.concatenate %1, %3, %5 in 1 : vector<4x128xf32>, vector<4x128xf32>, vector<4x128xf32> -> vector<4x384xf32>
    %7 = tpu.iota {dimensions = array<i32: 1>} : vector<1x384xi32>
    %c128_i32 = arith.constant 128 : i32
    %8 = arith.muli %arg1, %c128_i32 : i32
    %c128_i32_8 = arith.constant 128 : i32
    %9 = arith.subi %8, %c128_i32_8 : i32
    %10 = vector.broadcast %9 : i32 to vector<1x384xi32>
    %11 = arith.addi %7, %10 : vector<1x384xi32>
    %c0_i32 = arith.constant 0 : i32
    %12 = vector.broadcast %c0_i32 : i32 to vector<1x384xi32>
    %13 = arith.cmpi sge, %11, %12 : vector<1x384xi32>
    %c16_i32 = arith.constant 16 : i32
    %14 = vector.broadcast %c16_i32 : i32 to vector<1x384xi32>
    %15 = arith.cmpi slt, %11, %14 : vector<1x384xi32>
    %16 = arith.andi %13, %15 : vector<1x384xi1>
    %cst = arith.constant 0.000000e+00 : f32
    %17 = vector.shape_cast %16 : vector<1x384xi1> to vector<1x384xi1>
    %18 = vector.broadcast %17 : vector<1x384xi1> to vector<4x384xi1>
    %19 = vector.broadcast %cst : f32 to vector<4x384xf32>
    %20 = arith.select %18, %6, %19 : vector<4x384xi1>, vector<4x384xf32>
    %c0_9 = arith.constant 0 : index
    %c0_10 = arith.constant 0 : index
    %21 = vector.load %arg5[%c0_9, %c0_10] : memref<4x5xf32, #tpu.memory_space<vmem>>, vector<4x5xf32>
    %22 = vector.extract_strided_slice %20 {offsets = [0, 126], sizes = [4, 128], strides = [1, 1]} : vector<4x384xf32> to vector<4x128xf32>
    %23 = vector.extract_strided_slice %21 {offsets = [0, 0], sizes = [4, 1], strides = [1, 1]} : vector<4x5xf32> to vector<4x1xf32>
    %24 = vector.broadcast %23 : vector<4x1xf32> to vector<4x128xf32>
    %25 = arith.mulf %22, %24 : vector<4x128xf32>
    %26 = vector.extract_strided_slice %20 {offsets = [0, 127], sizes = [4, 128], strides = [1, 1]} : vector<4x384xf32> to vector<4x128xf32>
    %27 = vector.extract_strided_slice %21 {offsets = [0, 1], sizes = [4, 1], strides = [1, 1]} : vector<4x5xf32> to vector<4x1xf32>
    %28 = vector.broadcast %27 : vector<4x1xf32> to vector<4x128xf32>
    %29 = arith.mulf %26, %28 : vector<4x128xf32>
    %30 = arith.addf %25, %29 : vector<4x128xf32>
    %31 = vector.extract_strided_slice %20 {offsets = [0, 128], sizes = [4, 128], strides = [1, 1]} : vector<4x384xf32> to vector<4x128xf32>
    %32 = vector.extract_strided_slice %21 {offsets = [0, 2], sizes = [4, 1], strides = [1, 1]} : vector<4x5xf32> to vector<4x1xf32>
    %33 = vector.broadcast %32 : vector<4x1xf32> to vector<4x128xf32>
    %34 = arith.mulf %31, %33 : vector<4x128xf32>
    %35 = arith.addf %30, %34 : vector<4x128xf32>
    %36 = vector.extract_strided_slice %20 {offsets = [0, 129], sizes = [4, 128], strides = [1, 1]} : vector<4x384xf32> to vector<4x128xf32>
    %37 = vector.extract_strided_slice %21 {offsets = [0, 3], sizes = [4, 1], strides = [1, 1]} : vector<4x5xf32> to vector<4x1xf32>
    %38 = vector.broadcast %37 : vector<4x1xf32> to vector<4x128xf32>
    %39 = arith.mulf %36, %38 : vector<4x128xf32>
    %40 = arith.addf %35, %39 : vector<4x128xf32>
    %41 = vector.extract_strided_slice %20 {offsets = [0, 130], sizes = [4, 128], strides = [1, 1]} : vector<4x384xf32> to vector<4x128xf32>
    %42 = vector.extract_strided_slice %21 {offsets = [0, 4], sizes = [4, 1], strides = [1, 1]} : vector<4x5xf32> to vector<4x1xf32>
    %43 = vector.broadcast %42 : vector<4x1xf32> to vector<4x128xf32>
    %44 = arith.mulf %41, %43 : vector<4x128xf32>
    %45 = arith.addf %40, %44 : vector<4x128xf32>
    %c0_11 = arith.constant 0 : index
    %c0_12 = arith.constant 0 : index
    %46 = vector.load %arg7[%c0_11, %c0_12] : memref<8x1xf32, #tpu.memory_space<vmem>>, vector<8x1xf32>
    %c0_13 = arith.constant 0 : index
    %c0_14 = arith.constant 0 : index
    %47 = vector.load %arg6[%c0_13, %c0_14] : memref<8x4xf32, #tpu.memory_space<vmem>>, vector<8x4xf32>
    %48 = vector.extract_strided_slice %47 {offsets = [0, 0], sizes = [8, 1], strides = [1, 1]} : vector<8x4xf32> to vector<8x1xf32>
    %49 = vector.extract_strided_slice %45 {offsets = [0, 0], sizes = [1, 128], strides = [1, 1]} : vector<4x128xf32> to vector<1x128xf32>
    %50 = vector.broadcast %48 : vector<8x1xf32> to vector<8x128xf32>
    %51 = vector.broadcast %49 : vector<1x128xf32> to vector<8x128xf32>
    %52 = arith.mulf %50, %51 : vector<8x128xf32>
    %53 = vector.broadcast %46 : vector<8x1xf32> to vector<8x128xf32>
    %54 = arith.addf %53, %52 : vector<8x128xf32>
    %55 = vector.extract_strided_slice %47 {offsets = [0, 1], sizes = [8, 1], strides = [1, 1]} : vector<8x4xf32> to vector<8x1xf32>
    %56 = vector.extract_strided_slice %45 {offsets = [1, 0], sizes = [1, 128], strides = [1, 1]} : vector<4x128xf32> to vector<1x128xf32>
    %57 = vector.broadcast %55 : vector<8x1xf32> to vector<8x128xf32>
    %58 = vector.broadcast %56 : vector<1x128xf32> to vector<8x128xf32>
    %59 = arith.mulf %57, %58 : vector<8x128xf32>
    %60 = arith.addf %54, %59 : vector<8x128xf32>
    %61 = vector.extract_strided_slice %47 {offsets = [0, 2], sizes = [8, 1], strides = [1, 1]} : vector<8x4xf32> to vector<8x1xf32>
    %62 = vector.extract_strided_slice %45 {offsets = [2, 0], sizes = [1, 128], strides = [1, 1]} : vector<4x128xf32> to vector<1x128xf32>
    %63 = vector.broadcast %61 : vector<8x1xf32> to vector<8x128xf32>
    %64 = vector.broadcast %62 : vector<1x128xf32> to vector<8x128xf32>
    %65 = arith.mulf %63, %64 : vector<8x128xf32>
    %66 = arith.addf %60, %65 : vector<8x128xf32>
    %67 = vector.extract_strided_slice %47 {offsets = [0, 3], sizes = [8, 1], strides = [1, 1]} : vector<8x4xf32> to vector<8x1xf32>
    %68 = vector.extract_strided_slice %45 {offsets = [3, 0], sizes = [1, 128], strides = [1, 1]} : vector<4x128xf32> to vector<1x128xf32>
    %69 = vector.broadcast %67 : vector<8x1xf32> to vector<8x128xf32>
    %70 = vector.broadcast %68 : vector<1x128xf32> to vector<8x128xf32>
    %71 = arith.mulf %69, %70 : vector<8x128xf32>
    %72 = arith.addf %66, %71 : vector<8x128xf32>
    %cst_15 = arith.constant 0.000000e+00 : f32
    %73 = vector.broadcast %cst_15 : f32 to vector<8x128xf32>
    %74 = arith.maximumf %72, %73 : vector<8x128xf32>
    %c0_16 = arith.constant 0 : index
    %c0_17 = arith.constant 0 : index
    %c0_18 = arith.constant 0 : index
    %75 = vector.load %arg8[%c0_16, %c0_17, %c0_18] : memref<1x8x128xf32, #tpu.memory_space<vmem>>, vector<1x8x128xf32>
    %76 = vector.shape_cast %75 : vector<1x8x128xf32> to vector<8x128xf32>
    %77 = vector.shape_cast %74 : vector<8x128xf32> to vector<1x8x128xf32>
    tpu.vector_store %arg8[%c0_16, %c0_17, %c0_18], %77 {strides = array<i32>} : memref<1x8x128xf32, #tpu.memory_space<vmem>>, vector<1x8x128xf32>,
    return
  }
  func.func @transform_0(%arg0: i32, %arg1: i32) -> (i32, i32, i32) {
    %c1_i32 = arith.constant 1 : i32
    %0 = arith.muli %arg1, %c1_i32 : i32
    %c1_i32_0 = arith.constant 1 : i32
    %1 = arith.subi %0, %c1_i32_0 : i32
    %c0_i32 = arith.constant 0 : i32
    %2 = arith.maxsi %1, %c0_i32 : i32
    %c0_i32_1 = arith.constant 0 : i32
    %c0_i32_2 = arith.constant 0 : i32
    return %arg0, %c0_i32_1, %2 : i32, i32, i32
  }
  func.func @transform_1(%arg0: i32, %arg1: i32) -> (i32, i32, i32) {
    %c0_i32 = arith.constant 0 : i32
    %c0_i32_0 = arith.constant 0 : i32
    return %arg0, %c0_i32, %arg1 : i32, i32, i32
  }
  func.func @transform_2(%arg0: i32, %arg1: i32) -> (i32, i32, i32) {
    %c1_i32 = arith.constant 1 : i32
    %0 = arith.addi %arg1, %c1_i32 : i32
    %c1_i32_0 = arith.constant 1 : i32
    %1 = arith.muli %0, %c1_i32_0 : i32
    %c0_i32 = arith.constant 0 : i32
    %2 = arith.minsi %1, %c0_i32 : i32
    %c0_i32_1 = arith.constant 0 : i32
    %c0_i32_2 = arith.constant 0 : i32
    return %arg0, %c0_i32_1, %2 : i32, i32, i32
  }
  func.func @transform_3(%arg0: i32, %arg1: i32) -> (i32, i32) {
    %c0_i32 = arith.constant 0 : i32
    %c0_i32_0 = arith.constant 0 : i32
    %c0_i32_1 = arith.constant 0 : i32
    return %c0_i32, %c0_i32_0 : i32, i32
  }
  func.func @transform_4(%arg0: i32, %arg1: i32) -> (i32, i32) {
    %c0_i32 = arith.constant 0 : i32
    %c0_i32_0 = arith.constant 0 : i32
    %c0_i32_1 = arith.constant 0 : i32
    return %c0_i32, %c0_i32_0 : i32, i32
  }
  func.func @transform_5(%arg0: i32, %arg1: i32) -> (i32, i32) {
    %c0_i32 = arith.constant 0 : i32
    %c0_i32_0 = arith.constant 0 : i32
    %c0_i32_1 = arith.constant 0 : i32
    return %c0_i32, %c0_i32_0 : i32, i32
  }
  func.func @transform_6(%arg0: i32, %arg1: i32) -> (i32, i32, i32) {
    %c0_i32 = arith.constant 0 : i32
    %c0_i32_0 = arith.constant 0 : i32
    return %arg0, %c0_i32, %arg1 : i32, i32, i32
  }
}

</mosaic_0001>

<llo_original>
// kernel: tpu_custom_call.1
$region0: #{tpu_custom_call.1}
  #allocation0 [shape = 'u32[]', space=smem, size = 0x4, offset = 0x4, fixed_abs, tag = 'smem constant byte address 0x4 - core index']
  #allocation1 [shape = 'u32[144,128]{1,0:T(1,128)}', space=vmem, size = 0x12000, scoped, tag = 'internal scratch']
  %s0 = inlined_call_operand.vmem [shape: f32[2,4,16], index: 0, kind: input, shape index: {}]
  %s1 = inlined_call_operand.vmem [shape: f32[2,4,16], index: 1, kind: input, shape index: {}]
  %s2 = inlined_call_operand.vmem [shape: f32[2,4,16], index: 2, kind: input, shape index: {}]
  %s3 = inlined_call_operand.hbm [shape: f32[4,5], index: 3, kind: input, shape index: {}]
  %s4 = inlined_call_operand.vmem [shape: f32[8,4], index: 4, kind: input, shape index: {}]
  %s5 = inlined_call_operand.vmem [shape: f32[8,1], index: 5, kind: input, shape index: {}]
  %s6 = inlined_call_operand.hbm [shape: f32[2,8,16], index: 6, kind: output, shape index: {}]
  %s7 = sld [smem:[#allocation0]]
  $region61: #{tpu_custom_call.1} parent=0
    _
  %s9 = ssub.s32 1, %s7
  %s10 = scalar_select 0, %s9, %s7
  $region1: #{tpu_custom_call.1} parent=0
    #allocation2 [shape = 'u8[2048]{0}', space=vmem, size = 0x800, scoped, tag = 'input window, operand 3, single buffered']
    #allocation3 [shape = 's32[2]{0}', space=sflag, size = 0x8, scoped, tag = 'scoped memory for tpu_custom_call.1']
    #allocation4 [shape = 's32[2]{0}', space=sflag, size = 0x8, scoped, tag = 'scoped memory for tpu_custom_call.1']
    #allocation5 [shape = 'u8[8192]{0}', space=vmem, size = 0x2000, scoped, tag = 'output window, operand 0']
    %11 = vsyncpa [#allocation3], 0
    %12 = vsyncpa [#allocation4], 0
    %s13 = scalar_lea.sflag [#allocation4], 1
    %14 = vsyncpa %s13, 0
    loop: start=0, step=1, limit=4
    $region2: #{tpu_custom_call.1} parent=1 // loop_pre_header
      _
    $region3: #{tpu_custom_call.1} parent=1 // loop_header
      %s16 = sphi 0, %s20
      %p17 = scmp.ge.s32.totalorder %s16, 4
      %s23 = sphi 0, %s35
      %s24 = sphi 0, %s31
      %s25 = sphi 0, %s23
      %s26 = sphi 0, %s24
      %s27 = sphi 0, %s25
      %s28 = sphi 0, %s26
      %s46 = sphi 0, %s48
      %s49 = sphi 0, %s46
      %s50 = sphi 0, %s49
      %s66 = sphi 0, %s50
      %s74 = sphi 0, %s76
      %s77 = sphi 0, %s74
      %s78 = sphi 0, %s77
      %s94 = sphi 0, %s78
      %s108 = sphi 0, %s110
      %s111 = sphi 0, %s108
      %s112 = sphi 0, %s111
      %s128 = sphi 0, %s112
      %s132 = sphi 0, %s132
      %s134 = sphi 0, %s132
      %s135 = sphi 0, %s134
      %s149 = sphi 0, %s135
      %s153 = sphi 0, %s153
      %s155 = sphi 0, %s153
      %s156 = sphi 0, %s155
      %s170 = sphi 0, %s156
      %s174 = sphi 0, %s174
      %s176 = sphi 0, %s174
      %s177 = sphi 0, %s176
      %s191 = sphi 0, %s177
      %s199 = sphi 0, %s201
      %s202 = sphi 0, %s199
      %s203 = sphi 0, %s202
      %s219 = sphi 0, %s203
    $region4: #{tpu_custom_call.1} parent=1 // loop_header_branch
      %19 = sbr.rel (%p17) target = $region8
    $region5: #{tpu_custom_call.1} parent=1 // loop_body
      %s21 = ssub.s32 %s16, 1
      %s22 = ssub.s32 %s16, 2
      %s29 = sadd.s32 1, %s24
      %p30 = scmp.ge.s32.totalorder %s29, 1
      %s31 = scalar_select %p30, 0, %s29
      %s32 = sadd.s32 1, %s23
      %s33 = scalar_select %p30, %s32, %s23
      %p34 = scmp.ge.s32.totalorder %s33, 2
      %s35 = scalar_select %p34, 0, %s33
      %s36 = ssub.s32 %s24, 1
      %p37 = scmp.gt.s32.totalorder %s36, 0
      %s38 = scalar_select %p37, %s36, 0
      %s39 = ssub.s32 %s31, 1
      %p40 = scmp.gt.s32.totalorder %s39, 0
      %s41 = scalar_select %p40, %s39, 0
      %s42 = ssub.s32 %s23, %s35
      %s43 = ssub.s32 %s38, %s41
      %s44 = sor.u32 %s42, %s43
      %p45 = scmp.eq.s32.totalorder %s44, 0
      %s47 = sadd.s32 %s46, 1
      %s48 = scalar_select %p45, %s46, %s47
      %p51 = pneg %p45
      %p52 = scmp.eq.s32.totalorder %s16, 1
      %p53 = por %p51, %p52
      %p54 = scmp.ne.s32.totalorder %s46, %s49
      %p55 = scmp.eq.s32.totalorder %s16, 0
      %p56 = por %p54, %p55
      %p57 = scmp.ne.s32.totalorder %s46, %s49
      %p58 = scmp.eq.s32.totalorder %s21, 1
      %p59 = por %p57, %p58
      %p60 = scmp.ne.s32.totalorder %s49, %s50
      %p61 = scmp.eq.s32.totalorder %s21, 0
      %p62 = por %p60, %p61
      %p63 = scmp.ne.s32.totalorder %s49, %s50
      %p64 = scmp.eq.s32.totalorder %s22, 1
      %p65 = por %p63, %p64
      %p67 = scmp.ne.s32.totalorder %s50, %s66
      %p68 = scmp.eq.s32.totalorder %s22, 0
      %p69 = por %p67, %p68
      %s70 = ssub.s32 %s23, %s35
      %s71 = ssub.s32 %s24, %s31
      %s72 = sor.u32 %s70, %s71
      %p73 = scmp.eq.s32.totalorder %s72, 0
      %s75 = sadd.s32 %s74, 1
      %s76 = scalar_select %p73, %s74, %s75
      %p79 = pneg %p73
      %p80 = scmp.eq.s32.totalorder %s16, 1
      %p81 = por %p79, %p80
      %p82 = scmp.ne.s32.totalorder %s74, %s77
      %p83 = scmp.eq.s32.totalorder %s16, 0
      %p84 = por %p82, %p83
      %p85 = scmp.ne.s32.totalorder %s74, %s77
      %p86 = scmp.eq.s32.totalorder %s21, 1
      %p87 = por %p85, %p86
      %p88 = scmp.ne.s32.totalorder %s77, %s78
      %p89 = scmp.eq.s32.totalorder %s21, 0
      %p90 = por %p88, %p89
      %p91 = scmp.ne.s32.totalorder %s77, %s78
      %p92 = scmp.eq.s32.totalorder %s22, 1
      %p93 = por %p91, %p92
      %p95 = scmp.ne.s32.totalorder %s78, %s94
      %p96 = scmp.eq.s32.totalorder %s22, 0
      %p97 = por %p95, %p96
      %s98 = sadd.s32 %s24, 1
      %p99 = scmp.lt.s32.totalorder %s98, 0
      %s100 = scalar_select %p99, %s98, 0
      %s101 = sadd.s32 %s31, 1
      %p102 = scmp.lt.s32.totalorder %s101, 0
      %s103 = scalar_select %p102, %s101, 0
      %s104 = ssub.s32 %s23, %s35
      %s105 = ssub.s32 %s100, %s103
      %s106 = sor.u32 %s104, %s105
      %p107 = scmp.eq.s32.totalorder %s106, 0
      %s109 = sadd.s32 %s108, 1
      %s110 = scalar_select %p107, %s108, %s109
      %p113 = pneg %p107
      %p114 = scmp.eq.s32.totalorder %s16, 1
      %p115 = por %p113, %p114
      %p116 = scmp.ne.s32.totalorder %s108, %s111
      %p117 = scmp.eq.s32.totalorder %s16, 0
      %p118 = por %p116, %p117
      %p119 = scmp.ne.s32.totalorder %s108, %s111
      %p120 = scmp.eq.s32.totalorder %s21, 1
      %p121 = por %p119, %p120
      %p122 = scmp.ne.s32.totalorder %s111, %s112
      %p123 = scmp.eq.s32.totalorder %s21, 0
      %p124 = por %p122, %p123
      %p125 = scmp.ne.s32.totalorder %s111, %s112
      %p126 = scmp.eq.s32.totalorder %s22, 1
      %p127 = por %p125, %p126
      %p129 = scmp.ne.s32.totalorder %s112, %s128
      %p130 = scmp.eq.s32.totalorder %s22, 0
      %p131 = por %p129, %p130
      %s133 = sadd.s32 %s132, 1
      %p136 = scmp.eq.s32.totalorder %s16, 1
      %p137 = scmp.ne.s32.totalorder %s132, %s134
      %p138 = scmp.eq.s32.totalorder %s16, 0
      %p139 = por %p137, %p138
      %p140 = scmp.ne.s32.totalorder %s132, %s134
      %p141 = scmp.eq.s32.totalorder %s21, 1
      %p142 = por %p140, %p141
      %p143 = scmp.ne.s32.totalorder %s134, %s135
      %p144 = scmp.eq.s32.totalorder %s21, 0
      %p145 = por %p143, %p144
      %p146 = scmp.ne.s32.totalorder %s134, %s135
      %p147 = scmp.eq.s32.totalorder %s22, 1
      %p148 = por %p146, %p147
      %p150 = scmp.ne.s32.totalorder %s135, %s149
      %p151 = scmp.eq.s32.totalorder %s22, 0
      %p152 = por %p150, %p151
      %s154 = sadd.s32 %s153, 1
      %p157 = scmp.eq.s32.totalorder %s16, 1
      %p158 = scmp.ne.s32.totalorder %s153, %s155
      %p159 = scmp.eq.s32.totalorder %s16, 0
      %p160 = por %p158, %p159
      %p161 = scmp.ne.s32.totalorder %s153, %s155
      %p162 = scmp.eq.s32.totalorder %s21, 1
      %p163 = por %p161, %p162
      %p164 = scmp.ne.s32.totalorder %s155, %s156
      %p165 = scmp.eq.s32.totalorder %s21, 0
      %p166 = por %p164, %p165
      %p167 = scmp.ne.s32.totalorder %s155, %s156
      %p168 = scmp.eq.s32.totalorder %s22, 1
      %p169 = por %p167, %p168
      %p171 = scmp.ne.s32.totalorder %s156, %s170
      %p172 = scmp.eq.s32.totalorder %s22, 0
      %p173 = por %p171, %p172
      %s175 = sadd.s32 %s174, 1
      %p178 = scmp.eq.s32.totalorder %s16, 1
      %p179 = scmp.ne.s32.totalorder %s174, %s176
      %p180 = scmp.eq.s32.totalorder %s16, 0
      %p181 = por %p179, %p180
      %p182 = scmp.ne.s32.totalorder %s174, %s176
      %p183 = scmp.eq.s32.totalorder %s21, 1
      %p184 = por %p182, %p183
      %p185 = scmp.ne.s32.totalorder %s176, %s177
      %p186 = scmp.eq.s32.totalorder %s21, 0
      %p187 = por %p185, %p186
      %p188 = scmp.ne.s32.totalorder %s176, %s177
      %p189 = scmp.eq.s32.totalorder %s22, 1
      %p190 = por %p188, %p189
      %p192 = scmp.ne.s32.totalorder %s177, %s191
      %p193 = scmp.eq.s32.totalorder %s22, 0
      %p194 = por %p192, %p193
      %s195 = ssub.s32 %s23, %s35
      %s196 = ssub.s32 %s24, %s31
      %s197 = sor.u32 %s195, %s196
      %p198 = scmp.eq.s32.totalorder %s197, 0
      %s200 = sadd.s32 %s199, 1
      %s201 = scalar_select %p198, %s199, %s200
      %p204 = pneg %p198
      %p205 = scmp.eq.s32.totalorder %s16, 1
      %p206 = por %p204, %p205
      %p207 = scmp.ne.s32.totalorder %s199, %s202
      %p208 = scmp.eq.s32.totalorder %s16, 0
      %p209 = por %p207, %p208
      %p210 = scmp.ne.s32.totalorder %s199, %s202
      %p211 = scmp.eq.s32.totalorder %s21, 1
      %p212 = por %p210, %p211
      %p213 = scmp.ne.s32.totalorder %s202, %s203
      %p214 = scmp.eq.s32.totalorder %s21, 0
      %p215 = por %p213, %p214
      %p216 = scmp.ne.s32.totalorder %s202, %s203
      %p217 = scmp.eq.s32.totalorder %s22, 1
      %p218 = por %p216, %p217
      %p220 = scmp.ne.s32.totalorder %s203, %s219
      %p221 = scmp.eq.s32.totalorder %s22, 0
      %p222 = por %p220, %p221
      %p223 = scmp.le.s32.totalorder 1, %s16
      %p224 = scmp.lt.s32.totalorder %s16, 3
      %p225 = pnand %p223, %p224
      %p226 = pneg %p225
      // Predicated region
      $region9: #{tpu_custom_call.1} parent=5 // pred_check
        _
      $region10: #{tpu_custom_call.1} parent=5 // pred_check_branch
        %228 = sbr.rel (%p225) target = $region12
      $region11: #{tpu_custom_call.1} parent=5 // pred_region
        %s229 = ssub.s32 %s16, 1
        // Predicated region
        $region13: #{tpu_custom_call.1} parent=11 // pred_check
          %p230 = pneg %p145
        $region14: #{tpu_custom_call.1} parent=11 // pred_check_branch
          %232 = sbr.rel (%p230) target = $region16
        $region15: #{tpu_custom_call.1} parent=11 // pred_region
          %s234 = ssub.s32 64, 64
          %235 = vsyncadd [#allocation3], %s234
          %s237 = sshll.u32 [#allocation2], 4
          %s238 = int_to_ptr.vmem [resolvable:$true] %s237
          %240 = dma.hbm_to_vmem [thread:$0]  %s3, 64, %s238, [#allocation3]
        $region16: #{tpu_custom_call.1} parent=11 // pred_fallthru
          _
        // Predicated region
        $region17: #{tpu_custom_call.1} parent=11 // pred_check
          %p241 = pneg %p166
        $region18: #{tpu_custom_call.1} parent=11 // pred_check_branch
          %243 = sbr.rel (%p241) target = $region20
        $region19: #{tpu_custom_call.1} parent=11 // pred_region
          _
        $region20: #{tpu_custom_call.1} parent=11 // pred_fallthru
          _
        // Predicated region
        $region21: #{tpu_custom_call.1} parent=11 // pred_check
          %p244 = pneg %p187
        $region22: #{tpu_custom_call.1} parent=11 // pred_check_branch
          %246 = sbr.rel (%p244) target = $region24
        $region23: #{tpu_custom_call.1} parent=11 // pred_region
          _
        $region24: #{tpu_custom_call.1} parent=11 // pred_fallthru
          _
      $region12: #{tpu_custom_call.1} parent=5 // pred_fallthru
        _
      %p247 = scmp.lt.s32.totalorder %s16, 2
      // Predicated region
      $region25: #{tpu_custom_call.1} parent=5 // pred_check
        %p248 = pneg %p247
      $region26: #{tpu_custom_call.1} parent=5 // pred_check_branch
        %250 = sbr.rel (%p248) target = $region28
      $region27: #{tpu_custom_call.1} parent=5 // pred_region
        // Predicated region
        $region29: #{tpu_custom_call.1} parent=27 // pred_check
          %p251 = pneg %p56
        $region30: #{tpu_custom_call.1} parent=27 // pred_check_branch
          %253 = sbr.rel (%p251) target = $region32
        $region31: #{tpu_custom_call.1} parent=27 // pred_region
          %s254 = ssub.s32 %s24, 1
          %p255 = scmp.gt.s32.totalorder %s254, 0
          %s256 = scalar_select %p255, %s254, 0
          %p257 = scmp.lt.s32.totalorder %s23, 1
          %s258 = scalar_select %p257, %s23, 1
          %p259 = scmp.lt.s32.totalorder %s256, 0
          %s260 = scalar_select %p259, %s256, 0
          %s261 = sadd.s32 %s260, %s258
          %s262 = smul.addr %s261, 4
          %s263 = scalar_lea.vmem %s0, %s262
          %s264 = ssub.s32 %s24, 1
          %p265 = scmp.gt.s32.totalorder %s264, 0
          %s266 = scalar_select %p265, %s264, 0
        $region32: #{tpu_custom_call.1} parent=27 // pred_fallthru
          _
        // Predicated region
        $region33: #{tpu_custom_call.1} parent=27 // pred_check
          %p267 = pneg %p84
        $region34: #{tpu_custom_call.1} parent=27 // pred_check_branch
          %269 = sbr.rel (%p267) target = $region36
        $region35: #{tpu_custom_call.1} parent=27 // pred_region
          %p270 = scmp.lt.s32.totalorder %s23, 1
          %s271 = scalar_select %p270, %s23, 1
          %p272 = scmp.lt.s32.totalorder %s24, 0
          %s273 = scalar_select %p272, %s24, 0
          %s274 = sadd.s32 %s273, %s271
          %s275 = smul.addr %s274, 4
          %s276 = scalar_lea.vmem %s1, %s275
        $region36: #{tpu_custom_call.1} parent=27 // pred_fallthru
          _
        // Predicated region
        $region37: #{tpu_custom_call.1} parent=27 // pred_check
          %p277 = pneg %p118
        $region38: #{tpu_custom_call.1} parent=27 // pred_check_branch
          %279 = sbr.rel (%p277) target = $region40
        $region39: #{tpu_custom_call.1} parent=27 // pred_region
          %s280 = sadd.s32 %s24, 1
          %p281 = scmp.lt.s32.totalorder %s280, 0
          %s282 = scalar_select %p281, %s280, 0
          %p283 = scmp.lt.s32.totalorder %s23, 1
          %s284 = scalar_select %p283, %s23, 1
          %p285 = scmp.lt.s32.totalorder %s282, 0
          %s286 = scalar_select %p285, %s282, 0
          %s287 = sadd.s32 %s286, %s284
          %s288 = smul.addr %s287, 4
          %s289 = scalar_lea.vmem %s2, %s288
          %s290 = sadd.s32 %s24, 1
          %p291 = scmp.lt.s32.totalorder %s290, 0
          %s292 = scalar_select %p291, %s290, 0
        $region40: #{tpu_custom_call.1} parent=27 // pred_fallthru
          _
      $region28: #{tpu_custom_call.1} parent=5 // pred_fallthru
        _
      %p293 = scmp.le.s32.totalorder 1, %s16
      %p294 = scmp.lt.s32.totalorder %s16, 3
      %p295 = pnand %p293, %p294
      %p296 = pneg %p295
      // Predicated region
      $region41: #{tpu_custom_call.1} parent=5 // pred_check
        _
      $region42: #{tpu_custom_call.1} parent=5 // pred_check_branch
        %298 = sbr.rel (%p295) target = $region44
      $region43: #{tpu_custom_call.1} parent=5 // pred_region
        %s299 = ssub.s32 %s16, 1
        // Predicated region
        $region45: #{tpu_custom_call.1} parent=43 // pred_check
          %p300 = pneg %p145
        $region46: #{tpu_custom_call.1} parent=43 // pred_check_branch
          %302 = sbr.rel (%p300) target = $region48
        $region47: #{tpu_custom_call.1} parent=43 // pred_region
          %303 = dma.done [#allocation3], 64
        $region48: #{tpu_custom_call.1} parent=43 // pred_fallthru
          _
        %s304 = ssub.s32 %s26, 1
        %p305 = scmp.gt.s32.totalorder %s304, 0
        %s306 = scalar_select %p305, %s304, 0
        %p307 = scmp.lt.s32.totalorder %s25, 1
        %s308 = scalar_select %p307, %s25, 1
        %p309 = scmp.lt.s32.totalorder %s306, 0
        %s310 = scalar_select %p309, %s306, 0
        %s311 = sadd.s32 %s310, %s308
        %s312 = smul.addr %s311, 4
        %s313 = scalar_lea.vmem %s0, %s312
        %p314 = pneg %p62
        %p315 = pneg %p59
        %p316 = scmp.lt.s32.totalorder %s25, 1
        %s317 = scalar_select %p316, %s25, 1
        %p318 = scmp.lt.s32.totalorder %s26, 0
        %s319 = scalar_select %p318, %s26, 0
        %s320 = sadd.s32 %s319, %s317
        %s321 = smul.addr %s320, 4
        %s322 = scalar_lea.vmem %s1, %s321
        %p323 = pneg %p90
        %p324 = pneg %p87
        %s325 = sadd.s32 %s26, 1
        %p326 = scmp.lt.s32.totalorder %s325, 0
        %s327 = scalar_select %p326, %s325, 0
        %p328 = scmp.lt.s32.totalorder %s25, 1
        %s329 = scalar_select %p328, %s25, 1
        %p330 = scmp.lt.s32.totalorder %s327, 0
        %s331 = scalar_select %p330, %s327, 0
        %s332 = sadd.s32 %s331, %s329
        %s333 = smul.addr %s332, 4
        %s334 = scalar_lea.vmem %s2, %s333
        %p335 = pneg %p124
        %p336 = pneg %p121
        %p337 = pneg %p145
        %p338 = pneg %p142
        %p339 = pneg %p166
        %p340 = pneg %p163
        %p341 = pneg %p187
        %p342 = pneg %p184
        %p343 = pneg %p215
        %p344 = pneg %p212
        %s345 = sand.u32 %s202, 1
        %s346 = scalar_lea.sflag [#allocation4], %s345
        %s347 = sand.u32 %s202, 1
        %s348 = smul.addr %s347, 8
        %s349 = scalar_lea.vmem [#allocation5], %s348
        %s350 = ssub.s32 %s26, 1
        %p351 = scmp.gt.s32.totalorder %s350, 0
        %s352 = scalar_select %p351, %s350, 0
        %p353 = scmp.lt.s32.totalorder %s25, 1
        %s354 = scalar_select %p353, %s25, 1
        %p355 = scmp.lt.s32.totalorder %s352, 0
        %s356 = scalar_select %p355, %s352, 0
        %s357 = sadd.s32 %s356, %s354
        %s358 = smul.addr %s357, 4
        %s359 = scalar_lea.vmem %s0, %s358
        %s360 = ssub.s32 %s26, 1
        %p361 = scmp.gt.s32.totalorder %s360, 0
        %s362 = scalar_select %p361, %s360, 0
        %p363 = scmp.lt.s32.totalorder %s25, 1
        %s364 = scalar_select %p363, %s25, 1
        %p365 = scmp.lt.s32.totalorder %s26, 0
        %s366 = scalar_select %p365, %s26, 0
        %s367 = sadd.s32 %s366, %s364
        %s368 = smul.addr %s367, 4
        %s369 = scalar_lea.vmem %s1, %s368
        %s370 = sadd.s32 %s26, 1
        %p371 = scmp.lt.s32.totalorder %s370, 0
        %s372 = scalar_select %p371, %s370, 0
        %p373 = scmp.lt.s32.totalorder %s25, 1
        %s374 = scalar_select %p373, %s25, 1
        %p375 = scmp.lt.s32.totalorder %s372, 0
        %s376 = scalar_select %p375, %s372, 0
        %s377 = sadd.s32 %s376, %s374
        %s378 = smul.addr %s377, 4
        %s379 = scalar_lea.vmem %s2, %s378
        %s380 = sadd.s32 %s26, 1
        %p381 = scmp.lt.s32.totalorder %s380, 0
        %s382 = scalar_select %p381, %s380, 0
        %v383 = vld [vmem:[%s359] sm:$0xf]
        %v384 = vld [vmem:[%s369] sm:$0xf]
        %v385 = vld [vmem:[%s379] sm:$0xf]
        %v386 = vlaneseq
        %v387 = vand.u32 %v386, 127
        %v388 = vadd.s32 %v387, 128
        %v389 = vadd.s32 %v387, 256
        %s390 = smul.u32 %s26, 128
        %s391 = ssub.s32 %s390, 128
        %v392 = vstv %s391
        %v393 = vadd.s32 %v387, %v392
        %v394 = vadd.s32 %v388, %v392
        %v395 = vadd.s32 %v389, %v392
        %vm396 = vcmp.ge.s32.totalorder %v393, 0
        %vm397 = vcmp.ge.s32.totalorder %v394, 0
        %vm398 = vcmp.ge.s32.totalorder %v395, 0
        %vm399 = vcmp.lt.s32.totalorder %v393, 16
        %vm400 = vcmp.lt.s32.totalorder %v394, 16
        %vm401 = vcmp.lt.s32.totalorder %v395, 16
        %vm402 = vmand %vm396, %vm399
        %vm403 = vmand %vm397, %vm400
        %vm404 = vmand %vm398, %vm401
        %v405 = vsel %vm402, 1, 0
        %v406 = vsel %vm403, 1, 0
        %v407 = vsel %vm404, 1, 0
        %vm408 = vcmp.eq.s32.totalorder %v405, 1
        %vm409 = vcmp.eq.s32.totalorder %v406, 1
        %vm410 = vcmp.eq.s32.totalorder %v407, 1
        %v411 = vsel %vm408, %v383, 0.0
        %v412 = vsel %vm409, %v384, 0.0
        %v413 = vsel %vm410, %v385, 0.0
        %v414 = vld [vmem:[#allocation2] sm:$0xf]
        %416 = vset.pattern.permute.xlu0 0
        %417 = vperm.xlu0 %416, %v414
        %v418 = vpop.permute.xlu0 %417
        %v420 = vmul.f32 %v411, %v418
        %v421 = vmul.f32 %v412, %v418
        %422 = vset.pattern.permute.xlu0 1
        %423 = vperm.xlu0 %422, %v414
        %v424 = vpop.permute.xlu0 %423
        %v426 = vmul.f32 %v411, %v424
        %v427 = vmul.f32 %v412, %v424
        %430 = vrot.lane.b32.xlu0 %v426, 127
        %v431 = vpop.permute.xlu0 %430
        %432 = vrot.lane.b32.xlu0 %v427, 127
        %v433 = vpop.permute.xlu0 %432
        %vm434 = vcmask 1039360
        %v435 = vsel %vm434, %v431, %v433
        %v438 = vadd.f32 %v420, %v435
        %v439 = vadd.f32 %v421, %v433
        %440 = vset.pattern.permute.xlu0 2
        %441 = vperm.xlu0 %440, %v414
        %v442 = vpop.permute.xlu0 %441
        %v444 = vmul.f32 %v412, %v442
        %446 = vrot.lane.b32.xlu0 %v444, 126
        %v447 = vpop.permute.xlu0 %446
        %v449 = vadd.f32 %v438, %v447
        %v450 = vadd.f32 %v439, %v447
        %451 = vset.pattern.permute.xlu0 3
        %452 = vperm.xlu0 %451, %v414
        %v453 = vpop.permute.xlu0 %452
        %v455 = vmul.f32 %v412, %v453
        %v456 = vmul.f32 %v413, %v453
        %459 = vrot.lane.b32.xlu0 %v455, 125
        %v460 = vpop.permute.xlu0 %459
        %461 = vrot.lane.b32.xlu0 %v456, 125
        %v462 = vpop.permute.xlu0 %461
        %vm463 = vcmask 1022976
        %v464 = vsel %vm463, %v460, %v462
        %v467 = vadd.f32 %v449, %v460
        %v468 = vadd.f32 %v450, %v464
        %469 = vset.pattern.permute.xlu0 4
        %470 = vperm.xlu0 %469, %v414
        %v471 = vpop.permute.xlu0 %470
        %v473 = vmul.f32 %v412, %v471
        %v474 = vmul.f32 %v413, %v471
        %477 = vrot.lane.b32.xlu0 %v473, 124
        %v478 = vpop.permute.xlu0 %477
        %479 = vrot.lane.b32.xlu0 %v474, 124
        %v480 = vpop.permute.xlu0 %479
        %vm481 = vcmask 1014784
        %v482 = vsel %vm481, %v478, %v480
        %v485 = vadd.f32 %v467, %v478
        %v486 = vadd.f32 %v468, %v482
        %v487 = vld [vmem:[%s5] sm:$0xff]
        %v488 = vld [vmem:[%s4] sm:$0xff]
        %490 = vset.pattern.permute.xlu0 0
        %491 = vperm.xlu0 %490, %v488
        %v492 = vpop.permute.xlu0 %491
        %v494 = vlaneseq
        %v495 = vshrl.u32 %v494, 7
        %v496 = vsub.s32 0, %v495
        %v497 = vrot.slane %v485, %v496
        %v498 = vlaneseq
        %v499 = vshrl.u32 %v498, 7
        %v500 = vsub.s32 0, %v499
        %v501 = vrot.slane %v486, %v500
        %v502 = vmul.f32 %v492, %v497
        %v503 = vmul.f32 %v492, %v501
        %505 = vset.pattern.permute.xlu0 0
        %506 = vperm.xlu0 %505, %v487
        %v507 = vpop.permute.xlu0 %506
        %v509 = vadd.f32 %v507, %v502
        %v510 = vadd.f32 %v507, %v503
        %511 = vset.pattern.permute.xlu0 1
        %512 = vperm.xlu0 %511, %v488
        %v513 = vpop.permute.xlu0 %512
        %v515 = vlaneseq
        %v516 = vshrl.u32 %v515, 7
        %v517 = vsub.s32 1, %v516
        %v518 = vrot.slane %v485, %v517
        %v519 = vlaneseq
        %v520 = vshrl.u32 %v519, 7
        %v521 = vsub.s32 1, %v520
        %v522 = vrot.slane %v486, %v521
        %v523 = vmul.f32 %v513, %v518
        %v524 = vmul.f32 %v513, %v522
        %v525 = vadd.f32 %v509, %v523
        %v526 = vadd.f32 %v510, %v524
        %527 = vset.pattern.permute.xlu0 2
        %528 = vperm.xlu0 %527, %v488
        %v529 = vpop.permute.xlu0 %528
        %v531 = vlaneseq
        %v532 = vshrl.u32 %v531, 7
        %v533 = vsub.s32 2, %v532
        %v534 = vrot.slane %v485, %v533
        %v535 = vlaneseq
        %v536 = vshrl.u32 %v535, 7
        %v537 = vsub.s32 2, %v536
        %v538 = vrot.slane %v486, %v537
        %v539 = vmul.f32 %v529, %v534
        %v540 = vmul.f32 %v529, %v538
        %v541 = vadd.f32 %v525, %v539
        %v542 = vadd.f32 %v526, %v540
        %543 = vset.pattern.permute.xlu0 3
        %544 = vperm.xlu0 %543, %v488
        %v545 = vpop.permute.xlu0 %544
        %v547 = vlaneseq
        %v548 = vshrl.u32 %v547, 7
        %v549 = vsub.s32 3, %v548
        %v550 = vrot.slane %v485, %v549
        %v551 = vlaneseq
        %v552 = vshrl.u32 %v551, 7
        %v553 = vsub.s32 3, %v552
        %v554 = vrot.slane %v486, %v553
        %v555 = vmul.f32 %v545, %v550
        %v556 = vmul.f32 %v545, %v554
        %v557 = vadd.f32 %v541, %v555
        %v558 = vadd.f32 %v542, %v556
        %v559 = vmax.f32 %v557, 0.0
        %v560 = vmax.f32 %v558, 0.0
        %563 = vrot.lane.b32.xlu0 %v559, 2
        %v564 = vpop.permute.xlu0 %563
        %565 = vrot.lane.b32.xlu0 %v560, 2
        %v566 = vpop.permute.xlu0 %565
        %vm567 = vcmask 15360
        %v568 = vsel %vm567, %v564, %v566
        %570 = vst [vmem:[%s349] sm:$0xff] %v568
        %s571 = sand.u32 %s202, 1
        %s572 = scalar_lea.sflag [#allocation4], %s571
        %s573 = sand.u32 %s202, 1
        %s574 = smul.addr %s573, 8
        %s575 = scalar_lea.vmem [#allocation5], %s574
        // Predicated region
        $region49: #{tpu_custom_call.1} parent=43 // pred_check
          %p576 = pneg %p212
        $region50: #{tpu_custom_call.1} parent=43 // pred_check_branch
          %578 = sbr.rel (%p576) target = $region52
        $region51: #{tpu_custom_call.1} parent=43 // pred_region
          %s580 = ssub.s32 128, 128
          %581 = vsyncadd %s572, %s580
          %s582 = sadd.s32 %s26, %s25
          %s583 = smul.addr %s582, 128
          %s584 = scalar_lea.hbm %s6, %s583
          %s586 = sshll.u32 %s575, 4
          %s587 = int_to_ptr.vmem [resolvable:$true] %s586
          %589 = dma.vmem_to_hbm [thread:$0]  %s587, 128, %s584, %s572
        $region52: #{tpu_custom_call.1} parent=43 // pred_fallthru
          _
      $region44: #{tpu_custom_call.1} parent=5 // pred_fallthru
        _
      %p590 = scmp.le.s32.totalorder 2, %s16
      // Predicated region
      $region53: #{tpu_custom_call.1} parent=5 // pred_check
        %p591 = pneg %p590
      $region54: #{tpu_custom_call.1} parent=5 // pred_check_branch
        %593 = sbr.rel (%p591) target = $region56
      $region55: #{tpu_custom_call.1} parent=5 // pred_region
        %s594 = ssub.s32 %s16, 2
        // Predicated region
        $region57: #{tpu_custom_call.1} parent=55 // pred_check
          %p595 = pneg %p218
        $region58: #{tpu_custom_call.1} parent=55 // pred_check_branch
          %597 = sbr.rel (%p595) target = $region60
        $region59: #{tpu_custom_call.1} parent=55 // pred_region
          %s598 = sand.u32 %s203, 1
          %s599 = scalar_lea.sflag [#allocation4], %s598
          %s600 = sand.u32 %s203, 1
          %s601 = smul.addr %s600, 8
          %s602 = scalar_lea.vmem [#allocation5], %s601
          %603 = dma.done %s599, 128
        $region60: #{tpu_custom_call.1} parent=55 // pred_fallthru
          _
      $region56: #{tpu_custom_call.1} parent=5 // pred_fallthru
        _
    $region6: #{tpu_custom_call.1} parent=1 // loop_footer
      %s20 = sadd.s32 1, %s16
    $region7: #{tpu_custom_call.1} parent=1 // loop_footer_branch
      %15 = sbr.rel target = $region3
    $region8: #{tpu_custom_call.1} parent=1 // loop_exit
      _
    %604 = vsyncpa [#allocation3], 1
    %s605 = scalar_lea.sflag [#allocation3], 1
    %606 = vsyncpa %s605, 1
    %607 = vsyncpa [#allocation4], 1
    %s608 = scalar_lea.sflag [#allocation4], 1
    %609 = vsyncpa %s608, 1

</llo_original>
